<compile_context>
chip_gen: v5e
topology: v5e:2x2
jax: 0.10.0
libtpu: 0.0.40
codegen_flags: <defaults>
</compile_context>

<pallas_src>
import functools

import jax
import jax.numpy as jnp
from jax import lax
from jax.experimental import pallas as pl
from jax.experimental.pallas import tpu as pltpu


def _rup(x, m):
    return ((x + m - 1) // m) * m


def _pick_tile(n, pref=256):
    """Largest power-of-two tile (>=8) dividing n, else n itself (full block)."""
    t = min(pref, n)
    while t >= 8:
        if n % t == 0:
            return t
        t //= 2
    return n


_VMEM_LIMIT = 48 * 1024 * 1024   # safe on v5e/v6e (128 MiB) and v7x (64 MiB physical)


# ----------------------------------------------------------------------------
# Pallas kernels
# ----------------------------------------------------------------------------
def _dual_linear_kernel(x_ref, wc_ref, bc_ref, wd_ref, bd_ref, c_ref, d_ref):
    x = x_ref[...].astype(jnp.bfloat16)
    c = jnp.dot(x, wc_ref[...], preferred_element_type=jnp.float32) + bc_ref[...]
    d = jnp.dot(x, wd_ref[...], preferred_element_type=jnp.float32) + bd_ref[...]
    c_ref[...] = c
    d_ref[...] = d.astype(jnp.bfloat16)


@jax.jit
def pallas_center_direction(x, wc, bc, wd, bd):
    """center = x@wc + bc (f32); direction = x@wd + bd (bf16, axis-major padded layout)."""
    M, K = x.shape
    Oc = wc.shape[1]
    Od = wd.shape[1]
    TM = _pick_tile(M, 256)
    return pl.pallas_call(
        _dual_linear_kernel,
        grid=(M // TM,),
        in_specs=[
            pl.BlockSpec((TM, K), lambda i: (i, 0)),
            pl.BlockSpec((K, Oc), lambda i: (0, 0)),
            pl.BlockSpec((1, Oc), lambda i: (0, 0)),
            pl.BlockSpec((K, Od), lambda i: (0, 0)),
            pl.BlockSpec((1, Od), lambda i: (0, 0)),
        ],
        out_specs=(
            pl.BlockSpec((TM, Oc), lambda i: (i, 0)),
            pl.BlockSpec((TM, Od), lambda i: (i, 0)),
        ),
        out_shape=(
            jax.ShapeDtypeStruct((M, Oc), jnp.float32),
            jax.ShapeDtypeStruct((M, Od), jnp.bfloat16),
        ),
        compiler_params=pltpu.CompilerParams(
            dimension_semantics=("parallel",), vmem_limit_bytes=_VMEM_LIMIT),
    )(x, wc, bc, wd, bd)


def _aggregate_kernel(nbr_ref, qry_ref, dir_ref, o_ref, *, radius, decay_radius):
    # nbr_ref : (1, 8, N)      rows 0..2 = neighbor xyz, coord-major (lane axis = points)
    # qry_ref : (1, TN, 8)     cols 0..2 = query xyz for this row tile
    # dir_ref : (1, N, 6*Dp)   bf16 direction features, axis-major: col a*Dp + d
    # o_ref   : (1, TN, Dp)    out[n, d] = sum_a sum_m W_a[n, m] * dir[m, a*Dp + d]
    nbr = nbr_ref[0]
    qry = qry_ref[0]
    dvec = dir_ref[0]
    Dp = o_ref.shape[-1]

    dx = nbr[0:1, :] - qry[:, 0:1]        # (TN, N) = xyz[m,0] - xyz[n,0]
    dy = nbr[1:2, :] - qry[:, 1:2]
    dz = nbr[2:3, :] - qry[:, 2:3]
    dx2 = dx * dx
    dy2 = dy * dy
    dz2 = dz * dz
    norm2 = dx2 + dy2 + dz2

    inv_range = 1.0 / (decay_radius ** 2 - radius ** 2)
    dw = jnp.maximum((decay_radius ** 2 - norm2) * inv_range, 0.0)   # == 1-(n2-r^2)/(dr^2-r^2)
    dw = dw * pl.reciprocal(jnp.sum(dw, axis=1, keepdims=True), approx=True)
    g = dw * pl.reciprocal(norm2 + 1e-8, approx=True)                # dw / (|d|^2 + eps)

    # cos^2(axis +/- c) = max(+/- d_c, 0)^2 / |d|^2 -> shared squared diffs + sign masks
    bx = dx2 * g
    by = dy2 * g
    bz = dz2 * g
    zero = jnp.zeros_like(bx)
    wz_p = jnp.where(dz > 0, bz, zero)
    wz_n = bz - wz_p
    wy_p = jnp.where(dy > 0, by, zero)
    wy_n = by - wy_p
    wx_p = jnp.where(dx > 0, bx, zero)
    wx_n = bx - wx_p

    acc = jnp.zeros(o_ref.shape[1:], jnp.float32)
    # axis order matches the torch reference: +z, -z, +y, -y, +x, -x
    for a, w in enumerate((wz_p, wz_n, wy_p, wy_n, wx_p, wx_n)):
        acc = acc + jnp.dot(w.astype(jnp.bfloat16), dvec[:, a * Dp:(a + 1) * Dp],
                            preferred_element_type=jnp.float32)
    o_ref[0] = acc


@functools.partial(jax.jit, static_argnames=("radius", "decay_radius"))
def pallas_aggregate(direction, xyz, *, radius, decay_radius):
    """direction: (B*N, 6*Dp) bf16 axis-major; xyz: (B, N, 3) -> (B, N, Dp) f32.

    Equivalent to the reference `aggregate`: neighbors beyond the decay radius get zero
    distance weight, and the "center" is the nearest point = the query point itself."""
    B, N, _ = xyz.shape
    Dp6 = direction.shape[1]
    Dp = Dp6 // 6
    xyz = xyz.astype(jnp.float32)
    xyz_nbr = jnp.concatenate(
        [jnp.transpose(xyz, (0, 2, 1)), jnp.zeros((B, 5, N), jnp.float32)], axis=1)  # (B,8,N)
    Nq = _rup(N, 8)
    xyz_qry = jnp.zeros((B, Nq, 8), jnp.float32).at[:, :N, :3].set(xyz)
    dir3 = direction.reshape(B, N, Dp6)
    TN = _pick_tile(Nq, 256)
    out = pl.pallas_call(
        functools.partial(_aggregate_kernel, radius=float(radius),
                          decay_radius=float(decay_radius)),
        grid=(B, Nq // TN),
        in_specs=[
            pl.BlockSpec((1, 8, N), lambda b, i: (b, 0, 0)),
            pl.BlockSpec((1, TN, 8), lambda b, i: (b, i, 0)),
            pl.BlockSpec((1, N, Dp6), lambda b, i: (b, 0, 0)),
        ],
        out_specs=pl.BlockSpec((1, TN, Dp), lambda b, i: (b, i, 0)),
        out_shape=jax.ShapeDtypeStruct((B, Nq, Dp), jnp.float32),
        compiler_params=pltpu.CompilerParams(
            dimension_semantics=("parallel", "parallel"),
            vmem_limit_bytes=_VMEM_LIMIT),
    )(xyz_nbr, xyz_qry, dir3)
    return out[:, :N, :]


def _geo_tail_kernel(d_ref, c_ref, g1_ref, b1_ref, w2_ref, bw2_ref, g2_ref, b2_ref,
                     o_ref, *, eps):
    # BN(train-stats)+ReLU -> direction_mlp2 -> +center -> BN(train-stats)+ReLU, all fused.
    m = d_ref.shape[0]
    x = d_ref[...]
    mean1 = jnp.sum(x, axis=0, keepdims=True) * (1.0 / m)
    xc = x - mean1
    var1 = jnp.sum(xc * xc, axis=0, keepdims=True) * (1.0 / m)
    h = jnp.maximum(xc * lax.rsqrt(var1 + eps) * g1_ref[...] + b1_ref[...], 0.0)
    y = jnp.dot(h.astype(jnp.bfloat16), w2_ref[...], preferred_element_type=jnp.float32)
    y = y + bw2_ref[...] + c_ref[...]
    mean2 = jnp.sum(y, axis=0, keepdims=True) * (1.0 / m)
    yc = y - mean2
    var2 = jnp.sum(yc * yc, axis=0, keepdims=True) * (1.0 / m)
    o_ref[...] = jnp.maximum(yc * lax.rsqrt(var2 + eps) * g2_ref[...] + b2_ref[...], 0.0)


@jax.jit
def pallas_geo_tail(direction, center, g1, b1, w2, bw2, g2, b2):
    # TODO(synk): BN needs full-batch stats, so this is a single full block; huge B*N would
    #             need a two-pass tiled reduction.
    M, Dp = direction.shape
    Oc = center.shape[1]
    full = lambda r, c: pl.BlockSpec((r, c), lambda i: (0, 0))
    return pl.pallas_call(
        functools.partial(_geo_tail_kernel, eps=1e-5),
        grid=(1,),
        in_specs=[full(M, Dp), full(M, Oc), full(1, Dp), full(1, Dp),
                  full(Dp, Oc), full(1, Oc), full(1, Oc), full(1, Oc)],
        out_specs=full(M, Oc),
        out_shape=jax.ShapeDtypeStruct((M, Oc), jnp.float32),
        compiler_params=pltpu.CompilerParams(
            dimension_semantics=("arbitrary",), vmem_limit_bytes=_VMEM_LIMIT),
    )(direction, center, g1, b1, w2, bw2, g2, b2)


def _head_kernel(x_ref, w1_ref, b1_ref, g_ref, bt_ref, w2_ref, b2_ref, o_ref, *, eps):
    m = x_ref.shape[0]
    h = jnp.dot(x_ref[...].astype(jnp.bfloat16), w1_ref[...],
                preferred_element_type=jnp.float32) + b1_ref[...]
    mean = jnp.sum(h, axis=0, keepdims=True) * (1.0 / m)
    hc = h - mean
    var = jnp.sum(hc * hc, axis=0, keepdims=True) * (1.0 / m)
    h = jnp.maximum(hc * lax.rsqrt(var + eps) * g_ref[...] + bt_ref[...], 0.0)
    z = jnp.dot(h.astype(jnp.bfloat16), w2_ref[...],
                preferred_element_type=jnp.float32) + b2_ref[...]
    o_ref[...] = pl.reciprocal(1.0 + jnp.exp(-z), approx=True)   # sigmoid


@jax.jit
def pallas_head(x, w1, b1, g, bt, w2, b2):
    M, K = x.shape
    H = w1.shape[1]
    O = w2.shape[1]
    full = lambda r, c: pl.BlockSpec((r, c), lambda i: (0, 0))
    return pl.pallas_call(
        functools.partial(_head_kernel, eps=1e-5),
        grid=(1,),
        in_specs=[full(M, K), full(K, H), full(1, H), full(1, H), full(1, H),
                  full(H, O), full(1, O)],
        out_specs=full(M, O),
        out_shape=jax.ShapeDtypeStruct((M, O), jnp.float32),
        compiler_params=pltpu.CompilerParams(
            dimension_semantics=("arbitrary",), vmem_limit_bytes=_VMEM_LIMIT),
    )(x, w1, b1, g, bt, w2, b2)


# ----------------------------------------------------------------------------
# Plain-JAX glue (data-dependent gathers / sorting / sampling)
# ----------------------------------------------------------------------------
def square_distance(src, dst):
    s2 = jnp.sum(src ** 2, -1)
    d2 = jnp.sum(dst ** 2, -1)
    return -2.0 * jnp.einsum("bnc,bmc->bnm", src, dst) + s2[:, :, None] + d2[:, None, :]


def index_points(points, idx):
    B = points.shape[0]
    batch = jnp.arange(B).reshape((B,) + (1,) * (idx.ndim - 1))
    return points[batch, idx]


def farthest_point_sample(xyz, npoint, key):
    # TODO(synk): sequential argmax FPS loop kept in JAX (lax.fori_loop); inherently serial.
    B, N, _ = xyz.shape
    farthest = jax.random.randint(key, (B,), 0, N, dtype=jnp.int32)
    distance = jnp.full((B, N), 1e10, jnp.float32)
    centroids = jnp.zeros((B, npoint), jnp.int32)
    barange = jnp.arange(B)

    def body(i, carry):
        centroids, distance, farthest = carry
        centroids = centroids.at[:, i].set(farthest)
        centroid = xyz[barange, farthest][:, None, :]
        dist = jnp.sum((xyz - centroid) ** 2, -1)
        distance = jnp.minimum(distance, dist)
        farthest = jnp.argmax(distance, axis=-1).astype(jnp.int32)
        return centroids, distance, farthest

    centroids, _, _ = lax.fori_loop(0, npoint, body, (centroids, distance, farthest))
    return centroids


def query_ball_point(radius, nsample, xyz, new_xyz):
    B, N, _ = xyz.shape
    S = new_xyz.shape[1]
    sqrdists = square_distance(new_xyz, xyz)
    group_idx = jnp.broadcast_to(jnp.arange(N, dtype=jnp.int32), (B, S, N))
    group_idx = jnp.where(sqrdists > radius ** 2, N, group_idx)
    group_idx = jnp.sort(group_idx, axis=-1)[:, :, :nsample]
    group_first = jnp.broadcast_to(group_idx[:, :, :1], group_idx.shape)
    group_idx = jnp.where(group_idx == N, group_first, group_idx)
    return group_idx


def sample_and_group(npoint, radius, nsample, xyz, points, key):
    fps_idx = farthest_point_sample(xyz, npoint, key)
    new_xyz = index_points(xyz, fps_idx)
    idx = query_ball_point(radius, nsample, xyz, new_xyz)
    new_points = index_points(points, idx)
    return new_xyz, new_points


def sample_and_group_all(xyz, points):
    B, N, C = xyz.shape
    new_xyz = jnp.zeros((B, 1, C), xyz.dtype)
    new_points = points.reshape(B, 1, N, -1)
    return new_xyz, new_points


# ----------------------------------------------------------------------------
# Parameters (deterministic in-script init, pre-padded / pre-permuted once) and modules
# ----------------------------------------------------------------------------
def init_linear(key, fan_in, fan_out):
    k1, k2 = jax.random.split(key)
    bound = 1.0 / (fan_in ** 0.5)
    w = jax.random.uniform(k1, (fan_in, fan_out), jnp.float32, -bound, bound)
    b = jax.random.uniform(k2, (fan_out,), jnp.float32, -bound, bound)
    return w, b


def init_geoconv(key, in_ch, out_ch, mid_ch):
    k = jax.random.split(key, 3)
    wc, bc = init_linear(k[0], in_ch, out_ch)
    wd, bd = init_linear(k[1], in_ch, mid_ch * 6)      # torch layout: col = d*6 + axis
    w2, b2 = init_linear(k[2], mid_ch, out_ch)
    Dp = _rup(mid_ch, 128)
    # Permute direction weights once to axis-major 128-lane blocks: new col a*Dp+d <- old d*6+a.
    wdp = jnp.zeros((in_ch, 6 * Dp), jnp.float32)
    bdp = jnp.zeros((1, 6 * Dp), jnp.float32)
    for a in range(6):
        wdp = wdp.at[:, a * Dp:a * Dp + mid_ch].set(wd[:, a::6])
        bdp = bdp.at[0, a * Dp:a * Dp + mid_ch].set(bd[a::6])
    w2p = jnp.zeros((Dp, out_ch), jnp.float32).at[:mid_ch, :].set(w2)
    return {
        "wc": wc.astype(jnp.bfloat16), "bc": bc.reshape(1, -1),
        "wd": wdp.astype(jnp.bfloat16), "bd": bdp,
        "g1": jnp.zeros((1, Dp), jnp.float32).at[0, :mid_ch].set(1.0),
        "b1": jnp.zeros((1, Dp), jnp.float32),
        "w2": w2p.astype(jnp.bfloat16), "b2": b2.reshape(1, -1),
        "g2": jnp.ones((1, out_ch), jnp.float32),
        "bt2": jnp.zeros((1, out_ch), jnp.float32),
    }


def geoconv_forward(p, xyz, points, radius, decay_radius):
    B, N, _ = points.shape
    flat = points.reshape(B * N, -1)
    center, direction = pallas_center_direction(flat, p["wc"], p["bc"], p["wd"], p["bd"])
    agg = pallas_aggregate(direction, xyz, radius=float(radius),
                           decay_radius=float(decay_radius))
    out = pallas_geo_tail(agg.reshape(B * N, -1), center,
                          p["g1"], p["b1"], p["w2"], p["b2"], p["g2"], p["bt2"])
    return out.reshape(B, N, -1)


class PointNetSetAbstraction:
    def __init__(self, key, npoint, radius, nsample, in_channel, out_chnls, mid_chnls, group_all):
        self.npoint, self.radius, self.nsample, self.group_all = npoint, radius, nsample, group_all
        self.convs = []
        last = in_channel
        for k, oc, mc in zip(jax.random.split(key, len(out_chnls)), out_chnls, mid_chnls):
            self.convs.append((init_geoconv(k, last, oc, mc), float(radius), float(2.0 * radius)))
            last = oc

    def __call__(self, xyz, points, key):
        for p, r, dr in self.convs:
            points = geoconv_forward(p, xyz, points, r, dr)
        if self.group_all:
            new_xyz, new_points = sample_and_group_all(xyz, points)
        else:
            new_xyz, new_points = sample_and_group(self.npoint, self.radius, self.nsample,
                                                   xyz, points, key)
        new_points = jnp.max(new_points, axis=2)   # neighborhood max (plain-JAX glue)
        return new_xyz, new_points


class PointNetFeaturePropagation:
    def __init__(self, key, radius, nsample, in_channel, out_chnls, mid_chnls):
        self.convs = []
        last = in_channel
        for k, oc, mc in zip(jax.random.split(key, len(out_chnls)), out_chnls, mid_chnls):
            self.convs.append((init_geoconv(k, last, oc, mc), float(radius), float(radius * 2.0)))
            last = oc

    def __call__(self, xyz1, xyz2, points1, points2):
        B, N, _ = xyz1.shape
        S = xyz2.shape[1]
        if S == 1:
            interpolated = jnp.tile(points2, (1, N, 1))
        else:
            dists = square_distance(xyz1, xyz2)
            neg, idx = lax.top_k(-dists, 3)
            d3 = -neg
            recip = 1.0 / (d3 + 1e-8)
            weight = recip / jnp.sum(recip, axis=2, keepdims=True)
            interpolated = jnp.sum(index_points(points2, idx) * weight[..., None], axis=2)
        new_points = interpolated if points1 is None else jnp.concatenate(
            [points1, interpolated], -1)
        for p, r, dr in self.convs:
            new_points = geoconv_forward(p, xyz1, new_points, r, dr)
        return new_points


class ParticleNet:
    """npoints/nsample default to the paper values (1024, 256, 64)/64; the demo below
    uses scaled-down sampling sizes so a small input cloud is valid."""

    def __init__(self, key, r, npoints=(1024, 256, 64), nsample=64):
        n1, n2, n3 = npoints
        ks = jax.random.split(key, 8)
        self.sa1 = PointNetSetAbstraction(ks[0], n1, r, nsample, 4, [64, 128], [64, 64], False)
        self.sa2 = PointNetSetAbstraction(ks[1], n2, r / 0.4, nsample, 128, [128, 256], [64, 64], False)
        self.sa3 = PointNetSetAbstraction(ks[2], n3, r / (0.4 * 0.4), nsample, 256, [256, 512], [64, 64], False)
        self.fp3 = PointNetFeaturePropagation(ks[3], r / (0.4 * 0.4), nsample, 512, [256, 256], [64, 64])
        self.fp2 = PointNetFeaturePropagation(ks[4], r / 0.4, nsample, 256, [256, 128], [64, 64])
        self.fp1 = PointNetFeaturePropagation(ks[5], r, nsample, 128, [64, 64], [64, 64])
        w1, b1 = init_linear(ks[6], 64, 32)
        w2, b2 = init_linear(ks[7], 32, 4)
        self.head = {
            "w1": w1.astype(jnp.bfloat16), "b1": b1.reshape(1, -1),
            "g": jnp.ones((1, 32), jnp.float32), "bt": jnp.zeros((1, 32), jnp.float32),
            "w2": w2.astype(jnp.bfloat16), "b2": b2.reshape(1, -1),
        }

    def __call__(self, xyz, key):
        l0_points = xyz[:, :, 3:]
        l0_xyz = xyz[:, :, :3]
        k1, k2, k3 = jax.random.split(key, 3)
        l1_xyz, l1_points = self.sa1(l0_xyz, l0_points, k1)
        l2_xyz, l2_points = self.sa2(l1_xyz, l1_points, k2)
        l3_xyz, l3_points = self.sa3(l2_xyz, l2_points, k3)
        l2_points = self.fp3(l2_xyz, l3_xyz, None, l3_points)
        l1_points = self.fp2(l1_xyz, l2_xyz, None, l2_points)
        l0_points = self.fp1(l0_xyz, l1_xyz, None, l1_points)
        B, N, _ = l0_points.shape
        h = self.head
        x = pallas_head(l0_points.reshape(B * N, -1), h["w1"], h["b1"],
                        h["g"], h["bt"], h["w2"], h["b2"])
        return x.reshape(B, N, -1)


if __name__ == "__main__":
    key = jax.random.PRNGKey(0)
    k_param, k_data, k_fps = jax.random.split(key, 3)
    B, N = 1, 64                                  # batch 1, N points, 7 = 3 xyz + 4 features
    net = ParticleNet(k_param, r=0.2, npoints=(32, 16, 8), nsample=16)
    xyz = jax.random.uniform(k_data, (B, N, 7), jnp.float32)
    out = net(xyz, k_fps)
    out = jax.block_until_ready(out)
    assert out.shape == (B, N, 4)
    assert bool(jnp.all(jnp.isfinite(out)))
    print("KERNEL_OK")
</pallas_src>

<mosaic_0001>
module attributes {stable_mosaic.version = 11 : i64} {
  func.func @_dual_linear_kernel(%arg0: i32, %arg1: memref<64x4xf32, #tpu.memory_space<vmem>>, %arg2: memref<4x64xbf16, #tpu.memory_space<vmem>>, %arg3: memref<1x64xf32, #tpu.memory_space<vmem>>, %arg4: memref<4x768xbf16, #tpu.memory_space<vmem>>, %arg5: memref<1x768xf32, #tpu.memory_space<vmem>>, %arg6: memref<64x64xf32, #tpu.memory_space<vmem>>, %arg7: memref<64x768xbf16, #tpu.memory_space<vmem>>) attributes {dimension_semantics = [#tpu.dimension_semantics<parallel>], iteration_bounds = array<i64: 1>, scalar_prefetch = 0 : i64, scratch_operands = 0 : i64, tpu.core_type = #tpu.core_type<tc>, window_params = [{transform_indices = @transform_0, window_bounds = array<i64: 64, 4>}, {pipeline_mode = #tpu.pipeline_mode<synchronous>, transform_indices = @transform_1, window_bounds = array<i64: 4, 64>}, {pipeline_mode = #tpu.pipeline_mode<synchronous>, transform_indices = @transform_2, window_bounds = array<i64: 1, 64>}, {pipeline_mode = #tpu.pipeline_mode<synchronous>, transform_indices = @transform_3, window_bounds = array<i64: 4, 768>}, {pipeline_mode = #tpu.pipeline_mode<synchronous>, transform_indices = @transform_4, window_bounds = array<i64: 1, 768>}, {transform_indices = @transform_5, window_bounds = array<i64: 64, 64>}, {transform_indices = @transform_6, window_bounds = array<i64: 64, 768>}]} {
    %c0 = arith.constant 0 : index
    %c0_0 = arith.constant 0 : index
    %0 = vector.load %arg1[%c0, %c0_0] : memref<64x4xf32, #tpu.memory_space<vmem>>, vector<64x4xf32>
    %1 = arith.truncf %0 : vector<64x4xf32> to vector<64x4xbf16>
    %c0_1 = arith.constant 0 : index
    %c0_2 = arith.constant 0 : index
    %2 = vector.load %arg2[%c0_1, %c0_2] : memref<4x64xbf16, #tpu.memory_space<vmem>>, vector<4x64xbf16>
    %cst = arith.constant dense<0.000000e+00> : vector<64x64xf32>
    %3 = tpu.matmul %1, %2, %cst {dimension_numbers = #tpu.dot_dimension_numbers<[1], [0], [0], [1], [0, 0, 1, 1], [], []>} : vector<64x4xbf16>, vector<4x64xbf16>, vector<64x64xf32> -> vector<64x64xf32>
    %c0_3 = arith.constant 0 : index
    %c0_4 = arith.constant 0 : index
    %4 = vector.load %arg3[%c0_3, %c0_4] : memref<1x64xf32, #tpu.memory_space<vmem>>, vector<1x64xf32>
    %5 = vector.broadcast %4 : vector<1x64xf32> to vector<64x64xf32>
    %6 = arith.addf %3, %5 : vector<64x64xf32>
    %c0_5 = arith.constant 0 : index
    %c0_6 = arith.constant 0 : index
    %7 = vector.load %arg4[%c0_5, %c0_6] : memref<4x768xbf16, #tpu.memory_space<vmem>>, vector<4x768xbf16>
    %cst_7 = arith.constant dense<0.000000e+00> : vector<64x768xf32>
    %8 = tpu.matmul %1, %7, %cst_7 {dimension_numbers = #tpu.dot_dimension_numbers<[1], [0], [0], [1], [0, 0, 1, 1], [], []>} : vector<64x4xbf16>, vector<4x768xbf16>, vector<64x768xf32> -> vector<64x768xf32>
    %c0_8 = arith.constant 0 : index
    %c0_9 = arith.constant 0 : index
    %9 = vector.load %arg5[%c0_8, %c0_9] : memref<1x768xf32, #tpu.memory_space<vmem>>, vector<1x768xf32>
    %10 = vector.broadcast %9 : vector<1x768xf32> to vector<64x768xf32>
    %11 = arith.addf %8, %10 : vector<64x768xf32>
    %c0_10 = arith.constant 0 : index
    %c0_11 = arith.constant 0 : index
    %12 = vector.load %arg6[%c0_10, %c0_11] : memref<64x64xf32, #tpu.memory_space<vmem>>, vector<64x64xf32>
    tpu.vector_store %arg6[%c0_10, %c0_11], %6 {strides = array<i32>} : memref<64x64xf32, #tpu.memory_space<vmem>>, vector<64x64xf32>,
    %13 = arith.truncf %11 : vector<64x768xf32> to vector<64x768xbf16>
    %c0_12 = arith.constant 0 : index
    %c0_13 = arith.constant 0 : index
    %14 = vector.load %arg7[%c0_12, %c0_13] : memref<64x768xbf16, #tpu.memory_space<vmem>>, vector<64x768xbf16>
    tpu.vector_store %arg7[%c0_12, %c0_13], %13 {strides = array<i32>} : memref<64x768xbf16, #tpu.memory_space<vmem>>, vector<64x768xbf16>,
    return
  }
  func.func @transform_0(%arg0: i32) -> (i32, i32) {
    %c0_i32 = arith.constant 0 : i32
    %c0_i32_0 = arith.constant 0 : i32
    return %arg0, %c0_i32 : i32, i32
  }
  func.func @transform_1(%arg0: i32) -> (i32, i32) {
    %c0_i32 = arith.constant 0 : i32
    %c0_i32_0 = arith.constant 0 : i32
    %c0_i32_1 = arith.constant 0 : i32
    return %c0_i32, %c0_i32_0 : i32, i32
  }
  func.func @transform_2(%arg0: i32) -> (i32, i32) {
    %c0_i32 = arith.constant 0 : i32
    %c0_i32_0 = arith.constant 0 : i32
    %c0_i32_1 = arith.constant 0 : i32
    return %c0_i32, %c0_i32_0 : i32, i32
  }
  func.func @transform_3(%arg0: i32) -> (i32, i32) {
    %c0_i32 = arith.constant 0 : i32
    %c0_i32_0 = arith.constant 0 : i32
    %c0_i32_1 = arith.constant 0 : i32
    return %c0_i32, %c0_i32_0 : i32, i32
  }
  func.func @transform_4(%arg0: i32) -> (i32, i32) {
    %c0_i32 = arith.constant 0 : i32
    %c0_i32_0 = arith.constant 0 : i32
    %c0_i32_1 = arith.constant 0 : i32
    return %c0_i32, %c0_i32_0 : i32, i32
  }
  func.func @transform_5(%arg0: i32) -> (i32, i32) {
    %c0_i32 = arith.constant 0 : i32
    %c0_i32_0 = arith.constant 0 : i32
    return %arg0, %c0_i32 : i32, i32
  }
  func.func @transform_6(%arg0: i32) -> (i32, i32) {
    %c0_i32 = arith.constant 0 : i32
    %c0_i32_0 = arith.constant 0 : i32
    return %arg0, %c0_i32 : i32, i32
  }
}

</mosaic_0001>

<llo_original>
// kernel: pallas_center_direction.1
$region0: #{pallas_center_direction.1}
  #allocation0 [shape = 'u32[]', space=smem, size = 0x4, offset = 0x4, fixed_abs, tag = 'smem constant byte address 0x4 - core index']
  #allocation1 [shape = 'u32[72,128]{1,0:T(1,128)}', space=vmem, size = 0x9000, scoped, tag = 'internal scratch']
  %s0 = inlined_call_operand.vmem [shape: f32[64,4], index: 0, kind: input, shape index: {}]
  %s1 = inlined_call_operand.vmem [shape: bf16[4,64], index: 1, kind: input, shape index: {}]
  %s2 = inlined_call_operand.vmem [shape: f32[1,64], index: 2, kind: input, shape index: {}]
  %s3 = inlined_call_operand.vmem [shape: bf16[4,768], index: 3, kind: input, shape index: {}]
  %s4 = inlined_call_operand.vmem [shape: f32[1,768], index: 4, kind: input, shape index: {}]
  %s5 = inlined_call_operand.hbm [shape: f32[64,64], index: 5, kind: output, shape index: {0}]
  %s6 = inlined_call_operand.hbm [shape: bf16[64,768], index: 6, kind: output, shape index: {1}]
  %7 = xla_tuple %s5, %s6
  %s8 = sld [smem:[#allocation0]]
  $region38: #{pallas_center_direction.1} parent=0
    _
  %s10 = ssub.s32 1, %s8
  %s11 = scalar_select 0, %s10, %s8
  $region1: #{pallas_center_direction.1} parent=0
    #allocation2 [shape = 'u8[32768]{0}', space=vmem, size = 0x8000, scoped, tag = 'output window, operand 0, single buffered']
    #allocation3 [shape = 's32[1]{0}', space=sflag, size = 0x4, scoped, tag = 'scoped memory for pallas_center_direction.1']
    #allocation4 [shape = 'u8[98304]{0}', space=vmem, size = 0x18000, scoped, tag = 'output window, operand 1, single buffered']
    #allocation5 [shape = 's32[1]{0}', space=sflag, size = 0x4, scoped, tag = 'scoped memory for pallas_center_direction.1']
    %12 = vsyncpa [#allocation3], 0
    %13 = vsyncpa [#allocation5], 0
    // Predicated region
    $region2: #{pallas_center_direction.1} parent=1 // pred_check
      _
    $region3: #{pallas_center_direction.1} parent=1 // pred_check_branch
      %15 = sbr.rel (0) target = $region5
    $region4: #{pallas_center_direction.1} parent=1 // pred_region
      _
    $region5: #{pallas_center_direction.1} parent=1 // pred_fallthru
      _
    // Predicated region
    $region6: #{pallas_center_direction.1} parent=1 // pred_check
      _
    $region7: #{pallas_center_direction.1} parent=1 // pred_check_branch
      %17 = sbr.rel (0) target = $region9
    $region8: #{pallas_center_direction.1} parent=1 // pred_region
      _
    $region9: #{pallas_center_direction.1} parent=1 // pred_fallthru
      _
    // Predicated region
    $region10: #{pallas_center_direction.1} parent=1 // pred_check
      _
    $region11: #{pallas_center_direction.1} parent=1 // pred_check_branch
      %19 = sbr.rel (0) target = $region13
    $region12: #{pallas_center_direction.1} parent=1 // pred_region
      _
    $region13: #{pallas_center_direction.1} parent=1 // pred_fallthru
      _
    // Predicated region
    $region14: #{pallas_center_direction.1} parent=1 // pred_check
      _
    $region15: #{pallas_center_direction.1} parent=1 // pred_check_branch
      %21 = sbr.rel (0) target = $region17
    $region16: #{pallas_center_direction.1} parent=1 // pred_region
      _
    $region17: #{pallas_center_direction.1} parent=1 // pred_fallthru
      _
    // Predicated region
    $region18: #{pallas_center_direction.1} parent=1 // pred_check
      _
    $region19: #{pallas_center_direction.1} parent=1 // pred_check_branch
      %23 = sbr.rel (0) target = $region21
    $region20: #{pallas_center_direction.1} parent=1 // pred_region
      _
    $region21: #{pallas_center_direction.1} parent=1 // pred_fallthru
      _
    %v25 = vld [vmem:[%s0] sm:$0xff]
    %v26 = vld [vmem:[%s0 + $0x8] sm:$0xff]
    %v27 = vld [vmem:[%s0 + $0x10] sm:$0xff]
    %v28 = vld [vmem:[%s0 + $0x18] sm:$0xff]
    %v29 = vld [vmem:[%s0 + $0x20] sm:$0xff]
    %v30 = vld [vmem:[%s0 + $0x28] sm:$0xff]
    %v31 = vld [vmem:[%s0 + $0x30] sm:$0xff]
    %v32 = vld [vmem:[%s0 + $0x38] sm:$0xff]
    %v33 = vpack.c.bf16 %v26, %v25
    %v34 = vpack.c.bf16 %v28, %v27
    %v35 = vpack.c.bf16 %v30, %v29
    %v36 = vpack.c.bf16 %v32, %v31
    %v37 = vld [vmem:[%s1] sm:$0x3]
    %v38 = vld [vmem:[%s2] sm:$0x1]
    %v40 = vperm.slane %v38, 0
    %vm42 = vcmask 31744
    %v44 = vsel %vm42, %v33, 0
    %v47 = vsel %vm42, %v34, 0
    %v50 = vsel %vm42, %v35, 0
    %v53 = vsel %vm42, %v36, 0
    %vm55 = vcmask 1041408
    %v57 = vsel %vm55, %v37, 0
    %59 = vmatpush.bf16.msra.mxu0 0
    %60 = vmatpush.bf16.msra.mxu0 0
    %61 = vmatpush.bf16.msra.mxu0 0
    %62 = vmatpush.bf16.msra.mxu0 0
    %63 = vmatpush.bf16.msra.mxu0 0
    %64 = vmatpush.bf16.msra.mxu0 0
    %65 = vmatpush.bf16.msra.mxu0 0
    %66 = vmatpush.bf16.msra.mxu0 %v57
    %67 = vmatmul.bf16.gmra.mxu0 %v44
    %v68 = vpop.f32.mrf.mxu0
    %v69 = vadd.f32 %v40, %v68
    %v70 = vpop.f32.mrf.mxu0
    %v71 = vadd.f32 %v40, %v70
    %72 = vmatmul.bf16.gmra.mxu0 %v47
    %v73 = vpop.f32.mrf.mxu0
    %v74 = vadd.f32 %v40, %v73
    %v75 = vpop.f32.mrf.mxu0
    %v76 = vadd.f32 %v40, %v75
    %77 = vmatmul.bf16.gmra.mxu0 %v50
    %v78 = vpop.f32.mrf.mxu0
    %v79 = vadd.f32 %v40, %v78
    %v80 = vpop.f32.mrf.mxu0
    %v81 = vadd.f32 %v40, %v80
    %82 = vmatmul.bf16.gmra.mxu0 %v53
    %v83 = vpop.f32.mrf.mxu0
    %v84 = vadd.f32 %v40, %v83
    %v85 = vpop.f32.mrf.mxu0
    %v86 = vadd.f32 %v40, %v85
    %87 = vdwg.mxu0
    %v88 = vld [vmem:[%s3] sm:$0xff]
    %v89 = vld [vmem:[%s3 + $0x8] sm:$0xf]
    %v90 = vld [vmem:[%s4] sm:$0x3f]
    %v92 = vperm.slane %v90, 0
    %v93 = vperm.slane %v90, 1
    %v94 = vperm.slane %v90, 2
    %v95 = vperm.slane %v90, 3
    %v96 = vperm.slane %v90, 4
    %v97 = vperm.slane %v90, 5
    %105 = vst [vmem:[#allocation1] ss:$4 sm:$0xff] %v88
    %s107 = scalar_lea.vmem [#allocation1], 32
    %108 = vst [vmem:[%s107] ss:$4 sm:$0xff] %v89
    %v109 = vld.sshfl [vmem:[#allocation1] sm:$0xff pattern:$0x73625140]
    %v110 = vld.sshfl [vmem:[#allocation1 + $0x8] sm:$0xff pattern:$0x73625140]
    %v111 = vld.sshfl [vmem:[#allocation1 + $0x10] sm:$0xff pattern:$0x73625140]
    %v112 = vld.sshfl [vmem:[#allocation1 + $0x18] sm:$0xff pattern:$0x73625140]
    %v113 = vld.sshfl [vmem:[#allocation1 + $0x20] sm:$0xff pattern:$0x73625140]
    %v114 = vld.sshfl [vmem:[#allocation1 + $0x28] sm:$0xff pattern:$0x73625140]
    %v115 = vsel %vm55, %v109, 0
    %v117 = vsel %vm55, %v110, 0
    %v119 = vsel %vm55, %v111, 0
    %v121 = vsel %vm55, %v112, 0
    %v123 = vsel %vm55, %v113, 0
    %v125 = vsel %vm55, %v114, 0
    %127 = vmatpush.bf16.msra.mxu0 0
    %128 = vmatpush.bf16.msra.mxu0 0
    %129 = vmatpush.bf16.msra.mxu0 0
    %130 = vmatpush.bf16.msra.mxu0 0
    %131 = vmatpush.bf16.msra.mxu0 0
    %132 = vmatpush.bf16.msra.mxu0 0
    %133 = vmatpush.bf16.msra.mxu0 0
    %134 = vmatpush.bf16.msra.mxu0 %v115
    %135 = vmatmul.bf16.gmra.mxu0 %v44
    %v136 = vpop.f32.mrf.mxu0
    %v137 = vadd.f32 %v92, %v136
    %v138 = vpop.f32.mrf.mxu0
    %v139 = vadd.f32 %v92, %v138
    %140 = vmatmul.bf16.gmra.mxu0 %v47
    %v141 = vpop.f32.mrf.mxu0
    %v142 = vadd.f32 %v92, %v141
    %v143 = vpop.f32.mrf.mxu0
    %v144 = vadd.f32 %v92, %v143
    %145 = vmatmul.bf16.gmra.mxu0 %v50
    %v146 = vpop.f32.mrf.mxu0
    %v147 = vadd.f32 %v92, %v146
    %v148 = vpop.f32.mrf.mxu0
    %v149 = vadd.f32 %v92, %v148
    %150 = vmatmul.bf16.gmra.mxu0 %v53
    %v151 = vpop.f32.mrf.mxu0
    %v152 = vadd.f32 %v92, %v151
    %v153 = vpop.f32.mrf.mxu0
    %v154 = vadd.f32 %v92, %v153
    %155 = vdwg.mxu0
    %156 = vmatpush.bf16.msra.mxu0 0
    %157 = vmatpush.bf16.msra.mxu0 0
    %158 = vmatpush.bf16.msra.mxu0 0
    %159 = vmatpush.bf16.msra.mxu0 0
    %160 = vmatpush.bf16.msra.mxu0 0
    %161 = vmatpush.bf16.msra.mxu0 0
    %162 = vmatpush.bf16.msra.mxu0 0
    %163 = vmatpush.bf16.msra.mxu0 %v117
    %164 = vmatmul.bf16.gmra.mxu0 %v44
    %v165 = vpop.f32.mrf.mxu0
    %v166 = vadd.f32 %v93, %v165
    %v167 = vpop.f32.mrf.mxu0
    %v168 = vadd.f32 %v93, %v167
    %169 = vmatmul.bf16.gmra.mxu0 %v47
    %v170 = vpop.f32.mrf.mxu0
    %v171 = vadd.f32 %v93, %v170
    %v172 = vpop.f32.mrf.mxu0
    %v173 = vadd.f32 %v93, %v172
    %174 = vmatmul.bf16.gmra.mxu0 %v50
    %v175 = vpop.f32.mrf.mxu0
    %v176 = vadd.f32 %v93, %v175
    %v177 = vpop.f32.mrf.mxu0
    %v178 = vadd.f32 %v93, %v177
    %179 = vmatmul.bf16.gmra.mxu0 %v53
    %v180 = vpop.f32.mrf.mxu0
    %v181 = vadd.f32 %v93, %v180
    %v182 = vpop.f32.mrf.mxu0
    %v183 = vadd.f32 %v93, %v182
    %184 = vdwg.mxu0
    %185 = vmatpush.bf16.msra.mxu0 0
    %186 = vmatpush.bf16.msra.mxu0 0
    %187 = vmatpush.bf16.msra.mxu0 0
    %188 = vmatpush.bf16.msra.mxu0 0
    %189 = vmatpush.bf16.msra.mxu0 0
    %190 = vmatpush.bf16.msra.mxu0 0
    %191 = vmatpush.bf16.msra.mxu0 0
    %192 = vmatpush.bf16.msra.mxu0 %v119
    %193 = vmatmul.bf16.gmra.mxu0 %v44
    %v194 = vpop.f32.mrf.mxu0
    %v195 = vadd.f32 %v94, %v194
    %v196 = vpop.f32.mrf.mxu0
    %v197 = vadd.f32 %v94, %v196
    %198 = vmatmul.bf16.gmra.mxu0 %v47
    %v199 = vpop.f32.mrf.mxu0
    %v200 = vadd.f32 %v94, %v199
    %v201 = vpop.f32.mrf.mxu0
    %v202 = vadd.f32 %v94, %v201
    %203 = vmatmul.bf16.gmra.mxu0 %v50
    %v204 = vpop.f32.mrf.mxu0
    %v205 = vadd.f32 %v94, %v204
    %v206 = vpop.f32.mrf.mxu0
    %v207 = vadd.f32 %v94, %v206
    %208 = vmatmul.bf16.gmra.mxu0 %v53
    %v209 = vpop.f32.mrf.mxu0
    %v210 = vadd.f32 %v94, %v209
    %v211 = vpop.f32.mrf.mxu0
    %v212 = vadd.f32 %v94, %v211
    %213 = vdwg.mxu0
    %214 = vmatpush.bf16.msra.mxu0 0
    %215 = vmatpush.bf16.msra.mxu0 0
    %216 = vmatpush.bf16.msra.mxu0 0
    %217 = vmatpush.bf16.msra.mxu0 0
    %218 = vmatpush.bf16.msra.mxu0 0
    %219 = vmatpush.bf16.msra.mxu0 0
    %220 = vmatpush.bf16.msra.mxu0 0
    %221 = vmatpush.bf16.msra.mxu0 %v121
    %222 = vmatmul.bf16.gmra.mxu0 %v44
    %v223 = vpop.f32.mrf.mxu0
    %v224 = vadd.f32 %v95, %v223
    %v225 = vpop.f32.mrf.mxu0
    %v226 = vadd.f32 %v95, %v225
    %227 = vmatmul.bf16.gmra.mxu0 %v47
    %v228 = vpop.f32.mrf.mxu0
    %v229 = vadd.f32 %v95, %v228
    %v230 = vpop.f32.mrf.mxu0
    %v231 = vadd.f32 %v95, %v230
    %232 = vmatmul.bf16.gmra.mxu0 %v50
    %v233 = vpop.f32.mrf.mxu0
    %v234 = vadd.f32 %v95, %v233
    %v235 = vpop.f32.mrf.mxu0
    %v236 = vadd.f32 %v95, %v235
    %237 = vmatmul.bf16.gmra.mxu0 %v53
    %v238 = vpop.f32.mrf.mxu0
    %v239 = vadd.f32 %v95, %v238
    %v240 = vpop.f32.mrf.mxu0
    %v241 = vadd.f32 %v95, %v240
    %242 = vdwg.mxu0
    %243 = vmatpush.bf16.msra.mxu0 0
    %244 = vmatpush.bf16.msra.mxu0 0
    %245 = vmatpush.bf16.msra.mxu0 0
    %246 = vmatpush.bf16.msra.mxu0 0
    %247 = vmatpush.bf16.msra.mxu0 0
    %248 = vmatpush.bf16.msra.mxu0 0
    %249 = vmatpush.bf16.msra.mxu0 0
    %250 = vmatpush.bf16.msra.mxu0 %v123
    %251 = vmatmul.bf16.gmra.mxu0 %v44
    %v252 = vpop.f32.mrf.mxu0
    %v253 = vadd.f32 %v96, %v252
    %v254 = vpop.f32.mrf.mxu0
    %v255 = vadd.f32 %v96, %v254
    %256 = vmatmul.bf16.gmra.mxu0 %v47
    %v257 = vpop.f32.mrf.mxu0
    %v258 = vadd.f32 %v96, %v257
    %v259 = vpop.f32.mrf.mxu0
    %v260 = vadd.f32 %v96, %v259
    %261 = vmatmul.bf16.gmra.mxu0 %v50
    %v262 = vpop.f32.mrf.mxu0
    %v263 = vadd.f32 %v96, %v262
    %v264 = vpop.f32.mrf.mxu0
    %v265 = vadd.f32 %v96, %v264
    %266 = vmatmul.bf16.gmra.mxu0 %v53
    %v267 = vpop.f32.mrf.mxu0
    %v268 = vadd.f32 %v96, %v267
    %v269 = vpop.f32.mrf.mxu0
    %v270 = vadd.f32 %v96, %v269
    %271 = vdwg.mxu0
    %272 = vmatpush.bf16.msra.mxu0 0
    %273 = vmatpush.bf16.msra.mxu0 0
    %274 = vmatpush.bf16.msra.mxu0 0
    %275 = vmatpush.bf16.msra.mxu0 0
    %276 = vmatpush.bf16.msra.mxu0 0
    %277 = vmatpush.bf16.msra.mxu0 0
    %278 = vmatpush.bf16.msra.mxu0 0
    %279 = vmatpush.bf16.msra.mxu0 %v125
    %280 = vmatmul.bf16.gmra.mxu0 %v44
    %v281 = vpop.f32.mrf.mxu0
    %v282 = vadd.f32 %v97, %v281
    %v283 = vpop.f32.mrf.mxu0
    %v284 = vadd.f32 %v97, %v283
    %285 = vmatmul.bf16.gmra.mxu0 %v47
    %v286 = vpop.f32.mrf.mxu0
    %v287 = vadd.f32 %v97, %v286
    %v288 = vpop.f32.mrf.mxu0
    %v289 = vadd.f32 %v97, %v288
    %290 = vmatmul.bf16.gmra.mxu0 %v50
    %v291 = vpop.f32.mrf.mxu0
    %v292 = vadd.f32 %v97, %v291
    %v293 = vpop.f32.mrf.mxu0
    %v294 = vadd.f32 %v97, %v293
    %295 = vmatmul.bf16.gmra.mxu0 %v53
    %v296 = vpop.f32.mrf.mxu0
    %v297 = vadd.f32 %v97, %v296
    %v298 = vpop.f32.mrf.mxu0
    %v299 = vadd.f32 %v97, %v298
    %300 = vdwg.mxu0
    %vm301 = vcmask 523264
    %302 = vst.msk [vmem:[#allocation2] sm:$0xff] %vm301, %v69
    %303 = vst.msk [vmem:[#allocation2 + $0x8] sm:$0xff] %vm301, %v71
    %304 = vst.msk [vmem:[#allocation2 + $0x10] sm:$0xff] %vm301, %v74
    %305 = vst.msk [vmem:[#allocation2 + $0x18] sm:$0xff] %vm301, %v76
    %306 = vst.msk [vmem:[#allocation2 + $0x20] sm:$0xff] %vm301, %v79
    %307 = vst.msk [vmem:[#allocation2 + $0x28] sm:$0xff] %vm301, %v81
    %308 = vst.msk [vmem:[#allocation2 + $0x30] sm:$0xff] %vm301, %v84
    %309 = vst.msk [vmem:[#allocation2 + $0x38] sm:$0xff] %vm301, %v86
    %v310 = vpack.c.bf16 %v166, %v137
    %v311 = vpack.c.bf16 %v224, %v195
    %v312 = vpack.c.bf16 %v282, %v253
    %v313 = vpack.c.bf16 %v168, %v139
    %v314 = vpack.c.bf16 %v226, %v197
    %v315 = vpack.c.bf16 %v284, %v255
    %v316 = vpack.c.bf16 %v171, %v142
    %v317 = vpack.c.bf16 %v229, %v200
    %v318 = vpack.c.bf16 %v287, %v258
    %v319 = vpack.c.bf16 %v173, %v144
    %v320 = vpack.c.bf16 %v231, %v202
    %v321 = vpack.c.bf16 %v289, %v260
    %v322 = vpack.c.bf16 %v176, %v147
    %v323 = vpack.c.bf16 %v234, %v205
    %v324 = vpack.c.bf16 %v292, %v263
    %v325 = vpack.c.bf16 %v178, %v149
    %v326 = vpack.c.bf16 %v236, %v207
    %v327 = vpack.c.bf16 %v294, %v265
    %v328 = vpack.c.bf16 %v181, %v152
    %v329 = vpack.c.bf16 %v239, %v210
    %v330 = vpack.c.bf16 %v297, %v268
    %v331 = vpack.c.bf16 %v183, %v154
    %v332 = vpack.c.bf16 %v241, %v212
    %v333 = vpack.c.bf16 %v299, %v270
    %334 = vst [vmem:[#allocation4] sm:$0xff] %v310
    %335 = vst [vmem:[#allocation4 + $0x8] sm:$0xff] %v311
    %336 = vst [vmem:[#allocation4 + $0x10] sm:$0xff] %v312
    %337 = vst [vmem:[#allocation4 + $0x18] sm:$0xff] %v313
    %338 = vst [vmem:[#allocation4 + $0x20] sm:$0xff] %v314
    %339 = vst [vmem:[#allocation4 + $0x28] sm:$0xff] %v315
    %340 = vst [vmem:[#allocation4 + $0x30] sm:$0xff] %v316
    %341 = vst [vmem:[#allocation4 + $0x38] sm:$0xff] %v317
    %342 = vst [vmem:[#allocation4 + $0x40] sm:$0xff] %v318
    %343 = vst [vmem:[#allocation4 + $0x48] sm:$0xff] %v319
    %344 = vst [vmem:[#allocation4 + $0x50] sm:$0xff] %v320
    %345 = vst [vmem:[#allocation4 + $0x58] sm:$0xff] %v321
    %346 = vst [vmem:[#allocation4 + $0x60] sm:$0xff] %v322
    %347 = vst [vmem:[#allocation4 + $0x68] sm:$0xff] %v323
    %348 = vst [vmem:[#allocation4 + $0x70] sm:$0xff] %v324
    %349 = vst [vmem:[#allocation4 + $0x78] sm:$0xff] %v325
    %350 = vst [vmem:[#allocation4 + $0x80] sm:$0xff] %v326
    %351 = vst [vmem:[#allocation4 + $0x88] sm:$0xff] %v327
    %352 = vst [vmem:[#allocation4 + $0x90] sm:$0xff] %v328
    %353 = vst [vmem:[#allocation4 + $0x98] sm:$0xff] %v329
    %354 = vst [vmem:[#allocation4 + $0xa0] sm:$0xff] %v330
    %355 = vst [vmem:[#allocation4 + $0xa8] sm:$0xff] %v331
    %356 = vst [vmem:[#allocation4 + $0xb0] sm:$0xff] %v332
    %357 = vst [vmem:[#allocation4 + $0xb8] sm:$0xff] %v333
    // Predicated region
    $region22: #{pallas_center_direction.1} parent=1 // pred_check
      _
    $region23: #{pallas_center_direction.1} parent=1 // pred_check_branch
      %359 = sbr.rel (0) target = $region25
    $region24: #{pallas_center_direction.1} parent=1 // pred_region
      %361 = vsyncadd [#allocation3], 0
      %s362 = sshll.u32 [#allocation2], 4
      %s363 = int_to_ptr.vmem [resolvable:$true] %s362
      %s364 = sshll.u32 %s5, 4
      %s365 = int_to_ptr.hbm [resolvable:$true] %s364
      %370 = dma.vmem_to_hbm [thread:$0]  %s363, 1024, %s365, [#allocation3], 128, 128, 8
    $region25: #{pallas_center_direction.1} parent=1 // pred_fallthru
      _
    // Predicated region
    $region26: #{pallas_center_direction.1} parent=1 // pred_check
      _
    $region27: #{pallas_center_direction.1} parent=1 // pred_check_branch
      %372 = sbr.rel (0) target = $region29
    $region28: #{pallas_center_direction.1} parent=1 // pred_region
      %374 = vsyncadd [#allocation5], 0
      %s375 = sshll.u32 [#allocation4], 4
      %s376 = int_to_ptr.vmem [resolvable:$true] %s375
      %s377 = sshll.u32 %s6, 4
      %s378 = int_to_ptr.hbm [resolvable:$true] %s377
      %383 = dma.vmem_to_hbm [thread:$0]  %s376, 3072, %s378, [#allocation5], 384, 384, 24
    $region29: #{pallas_center_direction.1} parent=1 // pred_fallthru
      _
    // Predicated region
    $region30: #{pallas_center_direction.1} parent=1 // pred_check
      _
    $region31: #{pallas_center_direction.1} parent=1 // pred_check_branch
      %385 = sbr.rel (0) target = $region33
    $region32: #{pallas_center_direction.1} parent=1 // pred_region
      %387 = dma.done [#allocation3], 1024
    $region33: #{pallas_center_direction.1} parent=1 // pred_fallthru
      _
    // Predicated region
    $region34: #{pallas_center_direction.1} parent=1 // pred_check
      _
    $region35: #{pallas_center_direction.1} parent=1 // pred_check_branch
      %389 = sbr.rel (0) target = $region37
    $region36: #{pallas_center_direction.1} parent=1 // pred_region
      %391 = dma.done [#allocation5], 3072
    $region37: #{pallas_center_direction.1} parent=1 // pred_fallthru
      _
    %392 = vsyncpa [#allocation3], 1
    %393 = vsyncpa [#allocation5], 1

</llo_original>
